<compile_context>
chip_gen: v5e
topology: v5e:2x2
jax: 0.10.0
libtpu: 0.0.40
codegen_flags: <defaults>
</compile_context>

<pallas_src>
import math
import numpy as np

import jax
import jax.numpy as jnp
from jax.experimental import pallas as pl
from jax.experimental.pallas import tpu as pltpu


# --------------------------------------------------------------- utilities --

def _row_tile(m):
    """Largest row-tile (multiple of 8) that divides m, capped at 256."""
    for t in (256, 128, 64, 32, 16, 8):
        if m % t == 0:
            return t
    return m


# Abramowitz & Stegun 7.1.26 rational erf approximation (|err| <= 1.5e-7).
# Used instead of lax.erf inside kernels: only exp / div / abs / sign are
# needed, all of which have guaranteed Mosaic lowerings.
_ERF_P = 0.3275911
_ERF_A1 = 0.254829592
_ERF_A2 = -0.284496736
_ERF_A3 = 1.421413741
_ERF_A4 = -1.453152027
_ERF_A5 = 1.061405429


def _erf_approx(x):
    ax = jnp.abs(x)
    t = 1.0 / (1.0 + _ERF_P * ax)
    poly = t * (_ERF_A1 + t * (_ERF_A2 + t * (_ERF_A3 + t * (_ERF_A4 + t * _ERF_A5))))
    y = 1.0 - poly * jnp.exp(-ax * ax)
    return jnp.sign(x) * y


def _gelu_exact(x):
    """Exact (erf) GELU via the A&S erf approximation (matches nn.GELU to ~1e-7)."""
    return 0.5 * x * (1.0 + _erf_approx(x * (1.0 / math.sqrt(2.0))))


# ------------------------------------------------------------------ kernels --

def fused_linear_pallas(x, w, b=None, *, ln_w=None, ln_b=None, gelu=False,
                        residual=None, eps=1e-6):
    """y = [LayerNorm](x) @ w [+ b] [-> exact GELU] [+ residual].

    x:(M,K), w:(K,N), b:(N,), ln_w/ln_b:(K,), residual:(M,N).
    Only the M axis is tiled (parallel -> megacore sharding); K and N are the
    model dims of this block (<= 4*dim), so a single K/N block per row tile
    fits VMEM comfortably on v5e/v6e/v7x.  LayerNorm / GELU / residual are
    fused into the matmul epilogue to avoid extra HBM round trips.
    """
    M, K = x.shape
    N = w.shape[1]
    tm = _row_tile(M)

    has_b = b is not None
    has_ln = ln_w is not None
    has_res = residual is not None

    inputs = [x, w]
    in_specs = [pl.BlockSpec((tm, K), lambda i: (i, 0)),
                pl.BlockSpec((K, N), lambda i: (0, 0))]
    if has_b:
        inputs.append(b.reshape(1, N))
        in_specs.append(pl.BlockSpec((1, N), lambda i: (0, 0)))
    if has_ln:
        inputs += [ln_w.reshape(1, K), ln_b.reshape(1, K)]
        in_specs += [pl.BlockSpec((1, K), lambda i: (0, 0)),
                     pl.BlockSpec((1, K), lambda i: (0, 0))]
    if has_res:
        inputs.append(residual)
        in_specs.append(pl.BlockSpec((tm, N), lambda i: (i, 0)))

    def kernel(*refs):
        refs = list(refs)
        o_ref = refs[-1]
        x_ref, w_ref = refs[0], refs[1]
        pos = 2
        b_ref = lw_ref = lb_ref = r_ref = None
        if has_b:
            b_ref = refs[pos]; pos += 1
        if has_ln:
            lw_ref = refs[pos]; lb_ref = refs[pos + 1]; pos += 2
        if has_res:
            r_ref = refs[pos]; pos += 1

        xv = x_ref[...]
        if has_ln:
            mu = jnp.mean(xv, axis=-1, keepdims=True)
            var = jnp.mean(jnp.square(xv - mu), axis=-1, keepdims=True)
            xv = (xv - mu) * jax.lax.rsqrt(var + eps) * lw_ref[...] + lb_ref[...]
        y = jnp.dot(xv, w_ref[...], preferred_element_type=jnp.float32)
        if has_b:
            y = y + b_ref[...]
        if gelu:
            y = _gelu_exact(y)
        if has_res:
            y = y + r_ref[...]
        o_ref[...] = y.astype(o_ref.dtype)

    return pl.pallas_call(
        kernel,
        out_shape=jax.ShapeDtypeStruct((M, N), jnp.float32),
        grid=(M // tm,),
        in_specs=in_specs,
        out_specs=pl.BlockSpec((tm, N), lambda i: (i, 0)),
        compiler_params=pltpu.CompilerParams(dimension_semantics=("parallel",)),
    )(*inputs)


def attention_pallas(q_src, kv_src, rel, expand, *, num_heads, head_dim,
                     q_off=0, k_off=0, v_off=0):
    """Fused multi-head softmax attention with in-kernel decomposed rel-pos bias.

    q_src : (B, Nq, Cq)   queries of head h at columns [q_off + h*D, ...)
    kv_src: (B, Nk, Ckv)  keys at k_off + h*D, values at v_off + h*D
    rel   : (B, H, Nq, SK) concatenated per-axis rel-pos factors
    expand: (SK, Nk)      static 0/1 expansion so that bias = rel_h @ expand
    Returns (B, Nq, H*D) in channels-last layout (no HBM transposes).

    All heads of one batch element are processed per grid step; the (Nq,Nk)
    score matrix only ever lives in VMEM/vregs, never HBM.
    """
    B, Nq, Cq = q_src.shape
    _, Nk, Ckv = kv_src.shape
    H, D = num_heads, head_dim
    C = H * D
    SK = rel.shape[-1]
    scale = 1.0 / math.sqrt(D)
    # TODO(synk): for long sequences, tile the KV axis with online softmax
    # (flash-style, v7x 64 MiB VMEM); at these shapes the full Nk fits VMEM.

    def kernel(q_ref, kv_ref, rel_ref, e_ref, o_ref):
        qb = q_ref[0]        # (Nq, Cq)
        kvb = kv_ref[0]      # (Nk, Ckv)
        eb = e_ref[...]      # (SK, Nk)
        outs = []
        for h in range(H):   # static unroll; heads share the loaded kv block
            qh = qb[:, q_off + h * D: q_off + (h + 1) * D] * scale    # (Nq, D)
            kh = kvb[:, k_off + h * D: k_off + (h + 1) * D]           # (Nk, D)
            vh = kvb[:, v_off + h * D: v_off + (h + 1) * D]           # (Nk, D)
            rh = rel_ref[0, h]                                        # (Nq, SK)
            s = jax.lax.dot_general(qh, kh, (((1,), (1,)), ((), ())),
                                    preferred_element_type=jnp.float32)
            # decomposed rel-pos bias rebuilt in VMEM via a tiny MXU matmul
            s = s + jnp.dot(rh, eb, preferred_element_type=jnp.float32)
            m = jnp.max(s, axis=-1, keepdims=True)
            p = jnp.exp(s - m)
            l = jnp.sum(p, axis=-1, keepdims=True)
            o = jnp.dot(p, vh, preferred_element_type=jnp.float32)
            outs.append(o * pl.reciprocal(l, approx=True))
        # single lane-dense store of all heads
        o_ref[0] = jnp.concatenate(outs, axis=-1).astype(o_ref.dtype)

    return pl.pallas_call(
        kernel,
        out_shape=jax.ShapeDtypeStruct((B, Nq, C), jnp.float32),
        grid=(B,),
        in_specs=[pl.BlockSpec((1, Nq, Cq), lambda b: (b, 0, 0)),
                  pl.BlockSpec((1, Nk, Ckv), lambda b: (b, 0, 0)),
                  pl.BlockSpec((1, H, Nq, SK), lambda b: (b, 0, 0, 0)),
                  pl.BlockSpec((SK, Nk), lambda b: (0, 0))],
        out_specs=pl.BlockSpec((1, Nq, C), lambda b: (b, 0, 0)),
        compiler_params=pltpu.CompilerParams(dimension_semantics=("parallel",)),
    )(q_src, kv_src, rel, expand)


# -------------------------------------------------------- rel-pos utilities --

def build_rel_structures(q_dims, k_dims, tables, pads):
    """Static (trace-time) structures for decomposed rel-pos.

    Returns:
      rcat : (sumL, D)  stacked raw rel-pos tables (jnp, trainable params)
      idx  : (Nq, sumK) int32 gather indices into the stacked-table output
      expand: (sumK, Nk) float32 0/1 expansion matrix (bias = factors @ expand)
    """
    n_axes = len(q_dims)
    Nq = int(np.prod(q_dims))
    Nk = int(np.prod(k_dims))

    dists = []
    for qs_, ks_, tab, pad in zip(q_dims, k_dims, tables, pads):
        q_ratio = max(ks_ / qs_, 1.0)
        k_ratio = max(qs_ / ks_, 1.0)
        dist = (np.arange(qs_)[:, None] * q_ratio
                - (np.arange(ks_)[None, :] + (1.0 - ks_)) * k_ratio)
        dist = dist.astype(np.int64)
        if pad:
            d = int(2 * max(qs_, ks_) - 1)
            # TODO(synk): torch `_interpolate(rel_pos, d)` only supported as the
            # identity case (tables are built with exactly d rows).
            assert tab.shape[0] == d
        dists.append(dist)

    rcat = jnp.concatenate(tables, axis=0)                       # (sumL, D)
    Ls = [int(t.shape[0]) for t in tables]
    Ks = list(k_dims)
    sumK = int(sum(Ks))

    q_coords = np.stack(np.unravel_index(np.arange(Nq), q_dims), axis=-1)
    k_coords = np.stack(np.unravel_index(np.arange(Nk), k_dims), axis=-1)

    idx = np.zeros((Nq, sumK), np.int32)
    expand = np.zeros((sumK, Nk), np.float32)
    off_l = 0
    off_k = 0
    for a in range(n_axes):
        K = Ks[a]
        idx[:, off_k:off_k + K] = off_l + dists[a][q_coords[:, a], :]
        expand[off_k + k_coords[:, a], np.arange(Nk)] = 1.0
        off_l += Ls[a]
        off_k += K
    return rcat, jnp.asarray(idx), jnp.asarray(expand)


def rel_pos_factors(q_bnc, rcat, idx, num_heads):
    """Decomposed rel-pos factors (B, H, N, sumK).

    One dense (B*N*H, D) @ (D, sumL) Pallas matmul against the stacked rel-pos
    tables, then a tiny static-index gather.
    TODO(synk): the static-index gather (take_along_axis) stays in XLA; a
    Pallas DMA-gather is not worthwhile at these (<100 KiB) sizes.
    """
    B, N, C = q_bnc.shape
    H = num_heads
    D = C // H
    sum_l = rcat.shape[0]
    sum_k = idx.shape[1]
    p = fused_linear_pallas(q_bnc.reshape(B * N * H, D), jnp.transpose(rcat))
    p = p.reshape(B, N, H, sum_l)
    gidx = jnp.broadcast_to(idx[None, :, None, :], (B, N, H, sum_k))
    rel = jnp.take_along_axis(p, gidx, axis=-1)        # (B, N, H, sumK)
    return jnp.transpose(rel, (0, 2, 1, 3))            # (B, H, N, sumK)


# ------------------------------------------------------------ block forward --

def self2d_cross3d_block(params, q, k, q_thw, kv_thw, num_heads):
    B, Nq, C = q.shape
    H = num_heads
    D = C // H
    Nk = k.shape[1]
    q_t, q_h, q_w = q_thw
    k_t, k_h, k_w = kv_thw
    assert Nq == q_t * q_h * q_w and Nk == k_t * k_h * k_w
    # SelfAttention2D unflattens the query tokens to (q_h, q_w): the module is
    # only well-defined when the query volume is a single frame.
    assert q_t == 1, "SelfAttention2D requires q_t == 1 (query is a 2-D frame)"

    rcat2, idx2, exp2 = build_rel_structures(
        (q_h, q_w), (q_h, q_w),
        [params["self_rel_pos_h"], params["self_rel_pos_w"]], [True, True])
    rcat3, idx3, exp3 = build_rel_structures(
        (q_t, q_h, q_w), (k_t, k_h, k_w),
        [params["cross_rel_pos_t"], params["cross_rel_pos_h"],
         params["cross_rel_pos_w"]], [False, True, True])

    q2 = q.reshape(B * Nq, C)

    # ---- 1) 2-D decomposed-rel-pos self attention (LN fused into QKV proj) --
    qkv = fused_linear_pallas(
        q2, params["self_qkv_w"], params["self_qkv_b"],
        ln_w=params["norm_self_q_w"], ln_b=params["norm_self_q_b"],
    ).reshape(B, Nq, 3 * C)
    rel2 = rel_pos_factors(qkv[..., :C], rcat2, idx2, H)        # (B,H,Nq,kh+kw)
    attn = attention_pallas(qkv, qkv, rel2, exp2, num_heads=H, head_dim=D,
                            q_off=0, k_off=C, v_off=2 * C)
    q2 = fused_linear_pallas(attn.reshape(B * Nq, C), params["self_proj_w"],
                             params["self_proj_b"], residual=q2)

    # ---- 2) 3-D decomposed-rel-pos cross attention (LN fused, K/V fused) ----
    qc = fused_linear_pallas(
        q2, params["cross_q_w"], params["cross_q_b"],
        ln_w=params["norm_cross_q_w"], ln_b=params["norm_cross_q_b"],
    ).reshape(B, Nq, C)
    kv_w = jnp.concatenate([params["cross_k_w"], params["cross_v_w"]], axis=1)
    kv_b = jnp.concatenate([params["cross_k_b"], params["cross_v_b"]], axis=0)
    kvc = fused_linear_pallas(
        k.reshape(B * Nk, C), kv_w, kv_b,
        ln_w=params["norm_cross_k_w"], ln_b=params["norm_cross_k_b"],
    ).reshape(B, Nk, 2 * C)
    rel3 = rel_pos_factors(qc, rcat3, idx3, H)                  # (B,H,Nq,kt+kh+kw)
    attn = attention_pallas(qc, kvc, rel3, exp3, num_heads=H, head_dim=D,
                            q_off=0, k_off=0, v_off=C)
    q2 = fused_linear_pallas(attn.reshape(B * Nq, C), params["cross_proj_w"],
                             params["cross_proj_b"], residual=q2)

    # ---- 3) MLP: LN+fc1+GELU fused; fc2+residual fused ----------------------
    h = fused_linear_pallas(q2, params["fc1_w"], params["fc1_b"],
                            ln_w=params["norm_mlp_w"], ln_b=params["norm_mlp_b"],
                            gelu=True)
    out = fused_linear_pallas(h, params["fc2_w"], params["fc2_b"], residual=q2)
    # drop_path == 0  ->  identity (eval semantics)
    return out.reshape(B, Nq, C)


# ----------------------------------------------------------------- params ---

def init_params(key, dim, num_heads, mlp_ratio, max_q_thw, max_kv_thw):
    head_dim = dim // num_heads
    hidden = int(dim * mlp_ratio)
    keys = iter(jax.random.split(key, 16))

    def trunc(kk, shape):
        return (0.02 * jax.random.truncated_normal(kk, -2.0, 2.0, shape)).astype(jnp.float32)

    p = {}
    for name in ("norm_self_q", "norm_cross_q", "norm_cross_k", "norm_mlp"):
        p[f"{name}_w"] = jnp.ones((dim,), jnp.float32)
        p[f"{name}_b"] = jnp.zeros((dim,), jnp.float32)
    # SelfAttention2D
    p["self_qkv_w"] = trunc(next(keys), (dim, 3 * dim))
    p["self_qkv_b"] = jnp.zeros((3 * dim,), jnp.float32)
    p["self_proj_w"] = trunc(next(keys), (dim, dim))
    p["self_proj_b"] = jnp.zeros((dim,), jnp.float32)
    # rel-pos tables are zeros in the PyTorch __init__; small random values are
    # used here so the rel-pos bias path is actually exercised.
    p["self_rel_pos_h"] = 0.02 * jax.random.normal(next(keys), (2 * max_q_thw[1] - 1, head_dim), jnp.float32)
    p["self_rel_pos_w"] = 0.02 * jax.random.normal(next(keys), (2 * max_q_thw[2] - 1, head_dim), jnp.float32)
    # CrossAttention3D
    for name in ("cross_q", "cross_k", "cross_v", "cross_proj"):
        p[f"{name}_w"] = trunc(next(keys), (dim, dim))
        p[f"{name}_b"] = jnp.zeros((dim,), jnp.float32)
    p["cross_rel_pos_t"] = 0.02 * jax.random.normal(next(keys), (2 * max(max_q_thw[0], max_kv_thw[0]) - 1, head_dim), jnp.float32)
    p["cross_rel_pos_h"] = 0.02 * jax.random.normal(next(keys), (2 * max(max_q_thw[1], max_kv_thw[1]) - 1, head_dim), jnp.float32)
    p["cross_rel_pos_w"] = 0.02 * jax.random.normal(next(keys), (2 * max(max_q_thw[2], max_kv_thw[2]) - 1, head_dim), jnp.float32)
    # Mlp
    p["fc1_w"] = trunc(next(keys), (dim, hidden))
    p["fc1_b"] = jnp.zeros((hidden,), jnp.float32)
    p["fc2_w"] = trunc(next(keys), (hidden, dim))
    p["fc2_b"] = jnp.zeros((dim,), jnp.float32)
    return p


# --------------------------------------------------- pure-JAX reference -----

def get_rel_pos(q_size, k_size, rel_pos, pad=True):
    q_ratio = max(k_size / q_size, 1.0)
    k_ratio = max(q_size / k_size, 1.0)
    dist = (np.arange(q_size)[:, None] * q_ratio
            - (np.arange(k_size)[None, :] + (1.0 - k_size)) * k_ratio)
    if pad:
        d = int(2 * max(q_size, k_size) - 1)
        assert rel_pos.shape[0] == d
    return rel_pos[dist.astype(np.int64)]


def reference_block(params, q, k, q_thw, kv_thw, num_heads):
    B, Nq, C = q.shape
    H = num_heads
    D = C // H
    Nk = k.shape[1]
    q_t, q_h, q_w = q_thw
    k_t, k_h, k_w = kv_thw

    def ln(x, w, b):
        mu = x.mean(-1, keepdims=True)
        var = jnp.square(x - mu).mean(-1, keepdims=True)
        return (x - mu) / jnp.sqrt(var + 1e-6) * w + b

    def attn(qh, kh, vh, bias):
        scale = 1.0 / math.sqrt(D)
        s = jnp.einsum("bihd,bjhd->bhij", qh, kh) * scale + bias
        p = jax.nn.softmax(s, axis=-1)
        return jnp.einsum("bhij,bjhd->bihd", p, vh)

    x = ln(q, params["norm_self_q_w"], params["norm_self_q_b"])
    qkv = (x @ params["self_qkv_w"] + params["self_qkv_b"]).reshape(B, Nq, 3, H, D)
    qs, ks, vs = qkv[:, :, 0], qkv[:, :, 1], qkv[:, :, 2]
    Rh = get_rel_pos(q_h, q_h, params["self_rel_pos_h"])
    Rw = get_rel_pos(q_w, q_w, params["self_rel_pos_w"])
    q4 = qs.reshape(B, q_h, q_w, H, D)
    rel_h = jnp.einsum("bhwnc,hkc->bnhwk", q4, Rh)
    rel_w = jnp.einsum("bhwnc,wkc->bnhwk", q4, Rw)
    bias2d = (rel_h[..., :, None] + rel_w[..., None, :]).reshape(B, H, Nq, Nq)
    o = attn(qs, ks, vs, bias2d).reshape(B, Nq, C)
    q = q + (o @ params["self_proj_w"] + params["self_proj_b"])

    xq = ln(q, params["norm_cross_q_w"], params["norm_cross_q_b"])
    xk = ln(k, params["norm_cross_k_w"], params["norm_cross_k_b"])
    qc = (xq @ params["cross_q_w"] + params["cross_q_b"]).reshape(B, Nq, H, D)
    vc = (xk @ params["cross_v_w"] + params["cross_v_b"]).reshape(B, Nk, H, D)
    kc = (xk @ params["cross_k_w"] + params["cross_k_b"]).reshape(B, Nk, H, D)
    Rt = get_rel_pos(q_t, k_t, params["cross_rel_pos_t"], pad=False)
    Rh3 = get_rel_pos(q_h, k_h, params["cross_rel_pos_h"])
    Rw3 = get_rel_pos(q_w, k_w, params["cross_rel_pos_w"])
    q6 = qc.reshape(B, q_t, q_h, q_w, H, D)
    rel_t = jnp.einsum("bthwnc,tkc->bnthwk", q6, Rt)
    rel_h3 = jnp.einsum("bthwnc,hkc->bnthwk", q6, Rh3)
    rel_w3 = jnp.einsum("bthwnc,wkc->bnthwk", q6, Rw3)
    bias3d = (rel_t[..., :, None, None] + rel_h3[..., None, :, None]
              + rel_w3[..., None, None, :]).reshape(B, H, Nq, Nk)
    o = attn(qc, kc, vc, bias3d).reshape(B, Nq, C)
    q = q + (o @ params["cross_proj_w"] + params["cross_proj_b"])

    x = ln(q, params["norm_mlp_w"], params["norm_mlp_b"])
    h = jax.nn.gelu(x @ params["fc1_w"] + params["fc1_b"], approximate=False)
    return q + (h @ params["fc2_w"] + params["fc2_b"])


# ------------------------------------------------------------------- main ---

if __name__ == "__main__":
    dim, num_heads, mlp_ratio = 32, 4, 4.0
    q_thw = (1, 8, 8)        # query is a single 2-D frame  -> Nq = 64
    kv_thw = (4, 8, 8)       # key/value 3-D volume          -> Nk = 256
    B = 2
    Nq = q_thw[0] * q_thw[1] * q_thw[2]
    Nk = kv_thw[0] * kv_thw[1] * kv_thw[2]

    root = jax.random.PRNGKey(0)
    kp, kq, kk = jax.random.split(root, 3)
    params = init_params(kp, dim, num_heads, mlp_ratio, q_thw, kv_thw)
    q = jax.random.normal(kq, (B, Nq, dim), jnp.float32)
    k = jax.random.normal(kk, (B, Nk, dim), jnp.float32)

    out = jax.block_until_ready(
        self2d_cross3d_block(params, q, k, q_thw, kv_thw, num_heads))
    ref = jax.block_until_ready(
        reference_block(params, q, k, q_thw, kv_thw, num_heads))

    assert out.shape == (B, Nq, dim)
    max_err = float(jnp.max(jnp.abs(out - ref)))
    assert max_err < 3e-3, f"max abs error {max_err}"

    print("KERNEL_OK")
</pallas_src>

<mosaic_0001>
module attributes {stable_mosaic.version = 11 : i64} {
  func.func @kernel(%arg0: i32, %arg1: memref<128x32xf32, #tpu.memory_space<vmem>>, %arg2: memref<32x96xf32, #tpu.memory_space<vmem>>, %arg3: memref<1x96xf32, #tpu.memory_space<vmem>>, %arg4: memref<1x32xf32, #tpu.memory_space<vmem>>, %arg5: memref<1x32xf32, #tpu.memory_space<vmem>>, %arg6: memref<128x96xf32, #tpu.memory_space<vmem>>) attributes {dimension_semantics = [#tpu.dimension_semantics<parallel>], iteration_bounds = array<i64: 1>, scalar_prefetch = 0 : i64, scratch_operands = 0 : i64, tpu.core_type = #tpu.core_type<tc>, window_params = [{transform_indices = @transform_0, window_bounds = array<i64: 128, 32>}, {pipeline_mode = #tpu.pipeline_mode<synchronous>, transform_indices = @transform_1, window_bounds = array<i64: 32, 96>}, {pipeline_mode = #tpu.pipeline_mode<synchronous>, transform_indices = @transform_2, window_bounds = array<i64: 1, 96>}, {pipeline_mode = #tpu.pipeline_mode<synchronous>, transform_indices = @transform_3, window_bounds = array<i64: 1, 32>}, {pipeline_mode = #tpu.pipeline_mode<synchronous>, transform_indices = @transform_4, window_bounds = array<i64: 1, 32>}, {transform_indices = @transform_5, window_bounds = array<i64: 128, 96>}]} {
    %c0 = arith.constant 0 : index
    %c0_0 = arith.constant 0 : index
    %0 = vector.load %arg1[%c0, %c0_0] : memref<128x32xf32, #tpu.memory_space<vmem>>, vector<128x32xf32>
    %cst = arith.constant dense<0.000000e+00> : vector<128xf32>
    %1 = vector.multi_reduction <add>, %0, %cst [1] : vector<128x32xf32> to vector<128xf32>
    %2 = vector.shape_cast %1 : vector<128xf32> to vector<128x1xf32>
    %cst_1 = arith.constant 3.200000e+01 : f32
    %3 = vector.broadcast %cst_1 : f32 to vector<128x1xf32>
    %4 = arith.divf %2, %3 : vector<128x1xf32>
    %5 = vector.broadcast %4 : vector<128x1xf32> to vector<128x32xf32>
    %6 = arith.subf %0, %5 : vector<128x32xf32>
    %7 = arith.mulf %6, %6 : vector<128x32xf32>
    %cst_2 = arith.constant dense<0.000000e+00> : vector<128xf32>
    %8 = vector.multi_reduction <add>, %7, %cst_2 [1] : vector<128x32xf32> to vector<128xf32>
    %9 = vector.shape_cast %8 : vector<128xf32> to vector<128x1xf32>
    %cst_3 = arith.constant 3.200000e+01 : f32
    %10 = vector.broadcast %cst_3 : f32 to vector<128x1xf32>
    %11 = arith.divf %9, %10 : vector<128x1xf32>
    %12 = vector.broadcast %4 : vector<128x1xf32> to vector<128x32xf32>
    %13 = arith.subf %0, %12 : vector<128x32xf32>
    %cst_4 = arith.constant 9.99999997E-7 : f32
    %14 = vector.broadcast %cst_4 : f32 to vector<128x1xf32>
    %15 = arith.addf %11, %14 : vector<128x1xf32>
    %16 = math.rsqrt %15 : vector<128x1xf32>
    %17 = vector.broadcast %16 : vector<128x1xf32> to vector<128x32xf32>
    %18 = arith.mulf %13, %17 : vector<128x32xf32>
    %c0_5 = arith.constant 0 : index
    %c0_6 = arith.constant 0 : index
    %19 = vector.load %arg4[%c0_5, %c0_6] : memref<1x32xf32, #tpu.memory_space<vmem>>, vector<1x32xf32>
    %20 = vector.broadcast %19 : vector<1x32xf32> to vector<128x32xf32>
    %21 = arith.mulf %18, %20 : vector<128x32xf32>
    %c0_7 = arith.constant 0 : index
    %c0_8 = arith.constant 0 : index
    %22 = vector.load %arg5[%c0_7, %c0_8] : memref<1x32xf32, #tpu.memory_space<vmem>>, vector<1x32xf32>
    %23 = vector.broadcast %22 : vector<1x32xf32> to vector<128x32xf32>
    %24 = arith.addf %21, %23 : vector<128x32xf32>
    %c0_9 = arith.constant 0 : index
    %c0_10 = arith.constant 0 : index
    %25 = vector.load %arg2[%c0_9, %c0_10] : memref<32x96xf32, #tpu.memory_space<vmem>>, vector<32x96xf32>
    %cst_11 = arith.constant dense<0.000000e+00> : vector<128x96xf32>
    %26 = tpu.matmul %24, %25, %cst_11 {dimension_numbers = #tpu.dot_dimension_numbers<[1], [0], [0], [1], [0, 0, 1, 1], [], []>} : vector<128x32xf32>, vector<32x96xf32>, vector<128x96xf32> -> vector<128x96xf32>
    %c0_12 = arith.constant 0 : index
    %c0_13 = arith.constant 0 : index
    %27 = vector.load %arg3[%c0_12, %c0_13] : memref<1x96xf32, #tpu.memory_space<vmem>>, vector<1x96xf32>
    %28 = vector.broadcast %27 : vector<1x96xf32> to vector<128x96xf32>
    %29 = arith.addf %26, %28 : vector<128x96xf32>
    %c0_14 = arith.constant 0 : index
    %c0_15 = arith.constant 0 : index
    %30 = vector.load %arg6[%c0_14, %c0_15] : memref<128x96xf32, #tpu.memory_space<vmem>>, vector<128x96xf32>
    tpu.vector_store %arg6[%c0_14, %c0_15], %29 {strides = array<i32>} : memref<128x96xf32, #tpu.memory_space<vmem>>, vector<128x96xf32>,
    return
  }
  func.func @transform_0(%arg0: i32) -> (i32, i32) {
    %c0_i32 = arith.constant 0 : i32
    %c0_i32_0 = arith.constant 0 : i32
    return %arg0, %c0_i32 : i32, i32
  }
  func.func @transform_1(%arg0: i32) -> (i32, i32) {
    %c0_i32 = arith.constant 0 : i32
    %c0_i32_0 = arith.constant 0 : i32
    %c0_i32_1 = arith.constant 0 : i32
    return %c0_i32, %c0_i32_0 : i32, i32
  }
  func.func @transform_2(%arg0: i32) -> (i32, i32) {
    %c0_i32 = arith.constant 0 : i32
    %c0_i32_0 = arith.constant 0 : i32
    %c0_i32_1 = arith.constant 0 : i32
    return %c0_i32, %c0_i32_0 : i32, i32
  }
  func.func @transform_3(%arg0: i32) -> (i32, i32) {
    %c0_i32 = arith.constant 0 : i32
    %c0_i32_0 = arith.constant 0 : i32
    %c0_i32_1 = arith.constant 0 : i32
    return %c0_i32, %c0_i32_0 : i32, i32
  }
  func.func @transform_4(%arg0: i32) -> (i32, i32) {
    %c0_i32 = arith.constant 0 : i32
    %c0_i32_0 = arith.constant 0 : i32
    %c0_i32_1 = arith.constant 0 : i32
    return %c0_i32, %c0_i32_0 : i32, i32
  }
  func.func @transform_5(%arg0: i32) -> (i32, i32) {
    %c0_i32 = arith.constant 0 : i32
    %c0_i32_0 = arith.constant 0 : i32
    return %arg0, %c0_i32 : i32, i32
  }
}

</mosaic_0001>

<llo_original>
// kernel: tpu_custom_call.1
$region0: #{tpu_custom_call.1}
  #allocation0 [shape = 'u32[]', space=smem, size = 0x4, offset = 0x4, fixed_abs, tag = 'smem constant byte address 0x4 - core index']
  #allocation1 [shape = 'u32[72,128]{1,0:T(1,128)}', space=vmem, size = 0x9000, scoped, tag = 'internal scratch']
  %s0 = inlined_call_operand.vmem [shape: f32[128,32], index: 0, kind: input, shape index: {}]
  %s1 = inlined_call_operand.vmem [shape: f32[32,96], index: 1, kind: input, shape index: {}]
  %s2 = inlined_call_operand.vmem [shape: f32[1,96], index: 2, kind: input, shape index: {}]
  %s3 = inlined_call_operand.vmem [shape: f32[1,32], index: 3, kind: input, shape index: {}]
  %s4 = inlined_call_operand.vmem [shape: f32[1,32], index: 4, kind: input, shape index: {}]
  %s5 = inlined_call_operand.vmem [shape: f32[128,96], index: 5, kind: output, shape index: {}]
  %s6 = sld [smem:[#allocation0]]
  $region30: #{tpu_custom_call.1} parent=0
    _
  %s8 = ssub.s32 1, %s6
  %s9 = scalar_select 0, %s8, %s6
  // Predicated region
  $region2: #{tpu_custom_call.1} parent=0 // pred_check
    _
  $region3: #{tpu_custom_call.1} parent=0 // pred_check_branch
    %11 = sbr.rel (0) target = $region5
  $region4: #{tpu_custom_call.1} parent=0 // pred_region
    _
  $region5: #{tpu_custom_call.1} parent=0 // pred_fallthru
    _
  // Predicated region
  $region6: #{tpu_custom_call.1} parent=0 // pred_check
    _
  $region7: #{tpu_custom_call.1} parent=0 // pred_check_branch
    %13 = sbr.rel (0) target = $region9
  $region8: #{tpu_custom_call.1} parent=0 // pred_region
    _
  $region9: #{tpu_custom_call.1} parent=0 // pred_fallthru
    _
  // Predicated region
  $region10: #{tpu_custom_call.1} parent=0 // pred_check
    _
  $region11: #{tpu_custom_call.1} parent=0 // pred_check_branch
    %15 = sbr.rel (0) target = $region13
  $region12: #{tpu_custom_call.1} parent=0 // pred_region
    _
  $region13: #{tpu_custom_call.1} parent=0 // pred_fallthru
    _
  // Predicated region
  $region14: #{tpu_custom_call.1} parent=0 // pred_check
    _
  $region15: #{tpu_custom_call.1} parent=0 // pred_check_branch
    %17 = sbr.rel (0) target = $region17
  $region16: #{tpu_custom_call.1} parent=0 // pred_region
    _
  $region17: #{tpu_custom_call.1} parent=0 // pred_fallthru
    _
  // Predicated region
  $region18: #{tpu_custom_call.1} parent=0 // pred_check
    _
  $region19: #{tpu_custom_call.1} parent=0 // pred_check_branch
    %19 = sbr.rel (0) target = $region21
  $region20: #{tpu_custom_call.1} parent=0 // pred_region
    _
  $region21: #{tpu_custom_call.1} parent=0 // pred_fallthru
    _
  %v20 = vld [vmem:[%s0] sm:$0xff]
  %v21 = vld [vmem:[%s0 + $0x8] sm:$0xff]
  %v22 = vld [vmem:[%s0 + $0x10] sm:$0xff]
  %v23 = vld [vmem:[%s0 + $0x18] sm:$0xff]
  %v24 = vld [vmem:[%s0 + $0x20] sm:$0xff]
  %v25 = vld [vmem:[%s0 + $0x28] sm:$0xff]
  %v26 = vld [vmem:[%s0 + $0x30] sm:$0xff]
  %v27 = vld [vmem:[%s0 + $0x38] sm:$0xff]
  %v28 = vld [vmem:[%s0 + $0x40] sm:$0xff]
  %v29 = vld [vmem:[%s0 + $0x48] sm:$0xff]
  %v30 = vld [vmem:[%s0 + $0x50] sm:$0xff]
  %v31 = vld [vmem:[%s0 + $0x58] sm:$0xff]
  %v32 = vld [vmem:[%s0 + $0x60] sm:$0xff]
  %v33 = vld [vmem:[%s0 + $0x68] sm:$0xff]
  %v34 = vld [vmem:[%s0 + $0x70] sm:$0xff]
  %v35 = vld [vmem:[%s0 + $0x78] sm:$0xff]
  %vm36 = vcmask 261120
  %v37 = vsel %vm36, %v20, 0.0
  %38 = vadd.xlane.f32.xlu0 %v37
  %v39 = vpop.xlane.xlu0 %38
  %v40 = vsel %vm36, %v21, 0.0
  %41 = vadd.xlane.f32.xlu0 %v40
  %v42 = vpop.xlane.xlu0 %41
  %v43 = vsel %vm36, %v22, 0.0
  %44 = vadd.xlane.f32.xlu0 %v43
  %v45 = vpop.xlane.xlu0 %44
  %v46 = vsel %vm36, %v23, 0.0
  %47 = vadd.xlane.f32.xlu0 %v46
  %v48 = vpop.xlane.xlu0 %47
  %v49 = vsel %vm36, %v24, 0.0
  %50 = vadd.xlane.f32.xlu0 %v49
  %v51 = vpop.xlane.xlu0 %50
  %v52 = vsel %vm36, %v25, 0.0
  %53 = vadd.xlane.f32.xlu0 %v52
  %v54 = vpop.xlane.xlu0 %53
  %v55 = vsel %vm36, %v26, 0.0
  %56 = vadd.xlane.f32.xlu0 %v55
  %v57 = vpop.xlane.xlu0 %56
  %v58 = vsel %vm36, %v27, 0.0
  %59 = vadd.xlane.f32.xlu0 %v58
  %v60 = vpop.xlane.xlu0 %59
  %v61 = vsel %vm36, %v28, 0.0
  %62 = vadd.xlane.f32.xlu0 %v61
  %v63 = vpop.xlane.xlu0 %62
  %v64 = vsel %vm36, %v29, 0.0
  %65 = vadd.xlane.f32.xlu0 %v64
  %v66 = vpop.xlane.xlu0 %65
  %v67 = vsel %vm36, %v30, 0.0
  %68 = vadd.xlane.f32.xlu0 %v67
  %v69 = vpop.xlane.xlu0 %68
  %v70 = vsel %vm36, %v31, 0.0
  %71 = vadd.xlane.f32.xlu0 %v70
  %v72 = vpop.xlane.xlu0 %71
  %v73 = vsel %vm36, %v32, 0.0
  %74 = vadd.xlane.f32.xlu0 %v73
  %v75 = vpop.xlane.xlu0 %74
  %v76 = vsel %vm36, %v33, 0.0
  %77 = vadd.xlane.f32.xlu0 %v76
  %v78 = vpop.xlane.xlu0 %77
  %v79 = vsel %vm36, %v34, 0.0
  %80 = vadd.xlane.f32.xlu0 %v79
  %v81 = vpop.xlane.xlu0 %80
  %v82 = vsel %vm36, %v35, 0.0
  %83 = vadd.xlane.f32.xlu0 %v82
  %v84 = vpop.xlane.xlu0 %83
  %v85 = vrcp.pop 32.0
  %v86 = vmul.f32 32.0, %v85
  %v87 = vsub.f32 1.0, %v86
  %v88 = vmul.f32 %v85, %v87
  %v89 = vadd.f32 %v85, %v88
  %vm90 = vweird.f32 %v85
  %v91 = vsel %vm90, %v85, %v89
  %v92 = vmul.f32 %v39, %v91
  %v93 = vmul.f32 %v42, %v91
  %v94 = vmul.f32 %v45, %v91
  %v95 = vmul.f32 %v48, %v91
  %v96 = vmul.f32 %v51, %v91
  %v97 = vmul.f32 %v54, %v91
  %v98 = vmul.f32 %v57, %v91
  %v99 = vmul.f32 %v60, %v91
  %v100 = vmul.f32 %v63, %v91
  %v101 = vmul.f32 %v66, %v91
  %v102 = vmul.f32 %v69, %v91
  %v103 = vmul.f32 %v72, %v91
  %v104 = vmul.f32 %v75, %v91
  %v105 = vmul.f32 %v78, %v91
  %v106 = vmul.f32 %v81, %v91
  %v107 = vmul.f32 %v84, %v91
  %v108 = vsub.f32 %v20, %v92
  %v109 = vsub.f32 %v21, %v93
  %v110 = vsub.f32 %v22, %v94
  %v111 = vsub.f32 %v23, %v95
  %v112 = vsub.f32 %v24, %v96
  %v113 = vsub.f32 %v25, %v97
  %v114 = vsub.f32 %v26, %v98
  %v115 = vsub.f32 %v27, %v99
  %v116 = vsub.f32 %v28, %v100
  %v117 = vsub.f32 %v29, %v101
  %v118 = vsub.f32 %v30, %v102
  %v119 = vsub.f32 %v31, %v103
  %v120 = vsub.f32 %v32, %v104
  %v121 = vsub.f32 %v33, %v105
  %v122 = vsub.f32 %v34, %v106
  %v123 = vsub.f32 %v35, %v107
  %v124 = vmul.f32 %v108, %v108
  %v125 = vmul.f32 %v109, %v109
  %v126 = vmul.f32 %v110, %v110
  %v127 = vmul.f32 %v111, %v111
  %v128 = vmul.f32 %v112, %v112
  %v129 = vmul.f32 %v113, %v113
  %v130 = vmul.f32 %v114, %v114
  %v131 = vmul.f32 %v115, %v115
  %v132 = vmul.f32 %v116, %v116
  %v133 = vmul.f32 %v117, %v117
  %v134 = vmul.f32 %v118, %v118
  %v135 = vmul.f32 %v119, %v119
  %v136 = vmul.f32 %v120, %v120
  %v137 = vmul.f32 %v121, %v121
  %v138 = vmul.f32 %v122, %v122
  %v139 = vmul.f32 %v123, %v123
  %v140 = vsel %vm36, %v124, 0.0
  %141 = vadd.xlane.f32.xlu0 %v140
  %v142 = vpop.xlane.xlu0 %141
  %v143 = vsel %vm36, %v125, 0.0
  %144 = vadd.xlane.f32.xlu0 %v143
  %v145 = vpop.xlane.xlu0 %144
  %v146 = vsel %vm36, %v126, 0.0
  %147 = vadd.xlane.f32.xlu0 %v146
  %v148 = vpop.xlane.xlu0 %147
  %v149 = vsel %vm36, %v127, 0.0
  %150 = vadd.xlane.f32.xlu0 %v149
  %v151 = vpop.xlane.xlu0 %150
  %v152 = vsel %vm36, %v128, 0.0
  %153 = vadd.xlane.f32.xlu0 %v152
  %v154 = vpop.xlane.xlu0 %153
  %v155 = vsel %vm36, %v129, 0.0
  %156 = vadd.xlane.f32.xlu0 %v155
  %v157 = vpop.xlane.xlu0 %156
  %v158 = vsel %vm36, %v130, 0.0
  %159 = vadd.xlane.f32.xlu0 %v158
  %v160 = vpop.xlane.xlu0 %159
  %v161 = vsel %vm36, %v131, 0.0
  %162 = vadd.xlane.f32.xlu0 %v161
  %v163 = vpop.xlane.xlu0 %162
  %v164 = vsel %vm36, %v132, 0.0
  %165 = vadd.xlane.f32.xlu0 %v164
  %v166 = vpop.xlane.xlu0 %165
  %v167 = vsel %vm36, %v133, 0.0
  %168 = vadd.xlane.f32.xlu0 %v167
  %v169 = vpop.xlane.xlu0 %168
  %v170 = vsel %vm36, %v134, 0.0
  %171 = vadd.xlane.f32.xlu0 %v170
  %v172 = vpop.xlane.xlu0 %171
  %v173 = vsel %vm36, %v135, 0.0
  %174 = vadd.xlane.f32.xlu0 %v173
  %v175 = vpop.xlane.xlu0 %174
  %v176 = vsel %vm36, %v136, 0.0
  %177 = vadd.xlane.f32.xlu0 %v176
  %v178 = vpop.xlane.xlu0 %177
  %v179 = vsel %vm36, %v137, 0.0
  %180 = vadd.xlane.f32.xlu0 %v179
  %v181 = vpop.xlane.xlu0 %180
  %v182 = vsel %vm36, %v138, 0.0
  %183 = vadd.xlane.f32.xlu0 %v182
  %v184 = vpop.xlane.xlu0 %183
  %v185 = vsel %vm36, %v139, 0.0
  %186 = vadd.xlane.f32.xlu0 %v185
  %v187 = vpop.xlane.xlu0 %186
  %v188 = vmul.f32 %v142, %v91
  %v189 = vmul.f32 %v145, %v91
  %v190 = vmul.f32 %v148, %v91
  %v191 = vmul.f32 %v151, %v91
  %v192 = vmul.f32 %v154, %v91
  %v193 = vmul.f32 %v157, %v91
  %v194 = vmul.f32 %v160, %v91
  %v195 = vmul.f32 %v163, %v91
  %v196 = vmul.f32 %v166, %v91
  %v197 = vmul.f32 %v169, %v91
  %v198 = vmul.f32 %v172, %v91
  %v199 = vmul.f32 %v175, %v91
  %v200 = vmul.f32 %v178, %v91
  %v201 = vmul.f32 %v181, %v91
  %v202 = vmul.f32 %v184, %v91
  %v203 = vmul.f32 %v187, %v91
  %v204 = vadd.f32 %v188, 1e-06
  %v205 = vadd.f32 %v189, 1e-06
  %v206 = vadd.f32 %v190, 1e-06
  %v207 = vadd.f32 %v191, 1e-06
  %v208 = vadd.f32 %v192, 1e-06
  %v209 = vadd.f32 %v193, 1e-06
  %v210 = vadd.f32 %v194, 1e-06
  %v211 = vadd.f32 %v195, 1e-06
  %v212 = vadd.f32 %v196, 1e-06
  %v213 = vadd.f32 %v197, 1e-06
  %v214 = vadd.f32 %v198, 1e-06
  %v215 = vadd.f32 %v199, 1e-06
  %v216 = vadd.f32 %v200, 1e-06
  %v217 = vadd.f32 %v201, 1e-06
  %v218 = vadd.f32 %v202, 1e-06
  %v219 = vadd.f32 %v203, 1e-06
  %v220 = vrsqrt.pop %v204
  %v221 = vmul.f32 %v220, %v204
  %v222 = vmul.f32 %v221, %v220
  %v223 = vmul.f32 0.5, %v222
  %v224 = vsub.f32 1.5, %v223
  %v225 = vmul.f32 %v220, %v224
  %vm226 = vweird.f32 %v204
  %vm227 = vweird.f32 %v220
  %vm228 = vmor %vm226, %vm227
  %v229 = vsel %vm228, %v220, %v225
  %v230 = vrsqrt.pop %v205
  %v231 = vmul.f32 %v230, %v205
  %v232 = vmul.f32 %v231, %v230
  %v233 = vmul.f32 0.5, %v232
  %v234 = vsub.f32 1.5, %v233
  %v235 = vmul.f32 %v230, %v234
  %vm236 = vweird.f32 %v205
  %vm237 = vweird.f32 %v230
  %vm238 = vmor %vm236, %vm237
  %v239 = vsel %vm238, %v230, %v235
  %v240 = vrsqrt.pop %v206
  %v241 = vmul.f32 %v240, %v206
  %v242 = vmul.f32 %v241, %v240
  %v243 = vmul.f32 0.5, %v242
  %v244 = vsub.f32 1.5, %v243
  %v245 = vmul.f32 %v240, %v244
  %vm246 = vweird.f32 %v206
  %vm247 = vweird.f32 %v240
  %vm248 = vmor %vm246, %vm247
  %v249 = vsel %vm248, %v240, %v245
  %v250 = vrsqrt.pop %v207
  %v251 = vmul.f32 %v250, %v207
  %v252 = vmul.f32 %v251, %v250
  %v253 = vmul.f32 0.5, %v252
  %v254 = vsub.f32 1.5, %v253
  %v255 = vmul.f32 %v250, %v254
  %vm256 = vweird.f32 %v207
  %vm257 = vweird.f32 %v250
  %vm258 = vmor %vm256, %vm257
  %v259 = vsel %vm258, %v250, %v255
  %v260 = vrsqrt.pop %v208
  %v261 = vmul.f32 %v260, %v208
  %v262 = vmul.f32 %v261, %v260
  %v263 = vmul.f32 0.5, %v262
  %v264 = vsub.f32 1.5, %v263
  %v265 = vmul.f32 %v260, %v264
  %vm266 = vweird.f32 %v208
  %vm267 = vweird.f32 %v260
  %vm268 = vmor %vm266, %vm267
  %v269 = vsel %vm268, %v260, %v265
  %v270 = vrsqrt.pop %v209
  %v271 = vmul.f32 %v270, %v209
  %v272 = vmul.f32 %v271, %v270
  %v273 = vmul.f32 0.5, %v272
  %v274 = vsub.f32 1.5, %v273
  %v275 = vmul.f32 %v270, %v274
  %vm276 = vweird.f32 %v209
  %vm277 = vweird.f32 %v270
  %vm278 = vmor %vm276, %vm277
  %v279 = vsel %vm278, %v270, %v275
  %v280 = vrsqrt.pop %v210
  %v281 = vmul.f32 %v280, %v210
  %v282 = vmul.f32 %v281, %v280
  %v283 = vmul.f32 0.5, %v282
  %v284 = vsub.f32 1.5, %v283
  %v285 = vmul.f32 %v280, %v284
  %vm286 = vweird.f32 %v210
  %vm287 = vweird.f32 %v280
  %vm288 = vmor %vm286, %vm287
  %v289 = vsel %vm288, %v280, %v285
  %v290 = vrsqrt.pop %v211
  %v291 = vmul.f32 %v290, %v211
  %v292 = vmul.f32 %v291, %v290
  %v293 = vmul.f32 0.5, %v292
  %v294 = vsub.f32 1.5, %v293
  %v295 = vmul.f32 %v290, %v294
  %vm296 = vweird.f32 %v211
  %vm297 = vweird.f32 %v290
  %vm298 = vmor %vm296, %vm297
  %v299 = vsel %vm298, %v290, %v295
  %v300 = vrsqrt.pop %v212
  %v301 = vmul.f32 %v300, %v212
  %v302 = vmul.f32 %v301, %v300
  %v303 = vmul.f32 0.5, %v302
  %v304 = vsub.f32 1.5, %v303
  %v305 = vmul.f32 %v300, %v304
  %vm306 = vweird.f32 %v212
  %vm307 = vweird.f32 %v300
  %vm308 = vmor %vm306, %vm307
  %v309 = vsel %vm308, %v300, %v305
  %v310 = vrsqrt.pop %v213
  %v311 = vmul.f32 %v310, %v213
  %v312 = vmul.f32 %v311, %v310
  %v313 = vmul.f32 0.5, %v312
  %v314 = vsub.f32 1.5, %v313
  %v315 = vmul.f32 %v310, %v314
  %vm316 = vweird.f32 %v213
  %vm317 = vweird.f32 %v310
  %vm318 = vmor %vm316, %vm317
  %v319 = vsel %vm318, %v310, %v315
  %v320 = vrsqrt.pop %v214
  %v321 = vmul.f32 %v320, %v214
  %v322 = vmul.f32 %v321, %v320
  %v323 = vmul.f32 0.5, %v322
  %v324 = vsub.f32 1.5, %v323
  %v325 = vmul.f32 %v320, %v324
  %vm326 = vweird.f32 %v214
  %vm327 = vweird.f32 %v320
  %vm328 = vmor %vm326, %vm327
  %v329 = vsel %vm328, %v320, %v325
  %v330 = vrsqrt.pop %v215
  %v331 = vmul.f32 %v330, %v215
  %v332 = vmul.f32 %v331, %v330
  %v333 = vmul.f32 0.5, %v332
  %v334 = vsub.f32 1.5, %v333
  %v335 = vmul.f32 %v330, %v334
  %vm336 = vweird.f32 %v215
  %vm337 = vweird.f32 %v330
  %vm338 = vmor %vm336, %vm337
  %v339 = vsel %vm338, %v330, %v335
  %v340 = vrsqrt.pop %v216
  %v341 = vmul.f32 %v340, %v216
  %v342 = vmul.f32 %v341, %v340
  %v343 = vmul.f32 0.5, %v342
  %v344 = vsub.f32 1.5, %v343
  %v345 = vmul.f32 %v340, %v344
  %vm346 = vweird.f32 %v216
  %vm347 = vweird.f32 %v340
  %vm348 = vmor %vm346, %vm347
  %v349 = vsel %vm348, %v340, %v345
  %v350 = vrsqrt.pop %v217
  %v351 = vmul.f32 %v350, %v217
  %v352 = vmul.f32 %v351, %v350
  %v353 = vmul.f32 0.5, %v352
  %v354 = vsub.f32 1.5, %v353
  %v355 = vmul.f32 %v350, %v354
  %vm356 = vweird.f32 %v217
  %vm357 = vweird.f32 %v350
  %vm358 = vmor %vm356, %vm357
  %v359 = vsel %vm358, %v350, %v355
  %v360 = vrsqrt.pop %v218
  %v361 = vmul.f32 %v360, %v218
  %v362 = vmul.f32 %v361, %v360
  %v363 = vmul.f32 0.5, %v362
  %v364 = vsub.f32 1.5, %v363
  %v365 = vmul.f32 %v360, %v364
  %vm366 = vweird.f32 %v218
  %vm367 = vweird.f32 %v360
  %vm368 = vmor %vm366, %vm367
  %v369 = vsel %vm368, %v360, %v365
  %v370 = vrsqrt.pop %v219
  %v371 = vmul.f32 %v370, %v219
  %v372 = vmul.f32 %v371, %v370
  %v373 = vmul.f32 0.5, %v372
  %v374 = vsub.f32 1.5, %v373
  %v375 = vmul.f32 %v370, %v374
  %vm376 = vweird.f32 %v219
  %vm377 = vweird.f32 %v370
  %vm378 = vmor %vm376, %vm377
  %v379 = vsel %vm378, %v370, %v375
  %v380 = vmul.f32 %v108, %v229
  %v381 = vmul.f32 %v109, %v239
  %v382 = vmul.f32 %v110, %v249
  %v383 = vmul.f32 %v111, %v259
  %v384 = vmul.f32 %v112, %v269
  %v385 = vmul.f32 %v113, %v279
  %v386 = vmul.f32 %v114, %v289
  %v387 = vmul.f32 %v115, %v299
  %v388 = vmul.f32 %v116, %v309
  %v389 = vmul.f32 %v117, %v319
  %v390 = vmul.f32 %v118, %v329
  %v391 = vmul.f32 %v119, %v339
  %v392 = vmul.f32 %v120, %v349
  %v393 = vmul.f32 %v121, %v359
  %v394 = vmul.f32 %v122, %v369
  %v395 = vmul.f32 %v123, %v379
  %v396 = vld [vmem:[%s3] sm:$0x1]
  %v398 = vperm.slane %v396, 0
  %v400 = vmul.f32 %v380, %v398
  %v401 = vmul.f32 %v381, %v398
  %v402 = vmul.f32 %v382, %v398
  %v403 = vmul.f32 %v383, %v398
  %v404 = vmul.f32 %v384, %v398
  %v405 = vmul.f32 %v385, %v398
  %v406 = vmul.f32 %v386, %v398
  %v407 = vmul.f32 %v387, %v398
  %v408 = vmul.f32 %v388, %v398
  %v409 = vmul.f32 %v389, %v398
  %v410 = vmul.f32 %v390, %v398
  %v411 = vmul.f32 %v391, %v398
  %v412 = vmul.f32 %v392, %v398
  %v413 = vmul.f32 %v393, %v398
  %v414 = vmul.f32 %v394, %v398
  %v415 = vmul.f32 %v395, %v398
  %v416 = vld [vmem:[%s4] sm:$0x1]
  %v418 = vperm.slane %v416, 0
  %v420 = vadd.f32 %v400, %v418
  %v421 = vadd.f32 %v401, %v418
  %v422 = vadd.f32 %v402, %v418
  %v423 = vadd.f32 %v403, %v418
  %v424 = vadd.f32 %v404, %v418
  %v425 = vadd.f32 %v405, %v418
  %v426 = vadd.f32 %v406, %v418
  %v427 = vadd.f32 %v407, %v418
  %v428 = vadd.f32 %v408, %v418
  %v429 = vadd.f32 %v409, %v418
  %v430 = vadd.f32 %v410, %v418
  %v431 = vadd.f32 %v411, %v418
  %v432 = vadd.f32 %v412, %v418
  %v433 = vadd.f32 %v413, %v418
  %v434 = vadd.f32 %v414, %v418
  %v435 = vadd.f32 %v415, %v418
  %v436 = vld [vmem:[%s1] sm:$0xff]
  %v437 = vld [vmem:[%s1 + $0x8] sm:$0xff]
  %v438 = vld [vmem:[%s1 + $0x10] sm:$0xff]
  %v439 = vld [vmem:[%s1 + $0x18] sm:$0xff]
  %v440 = vld [vmem:[%s2] sm:$0x1]
  %v442 = vperm.slane %v440, 0
  %v445 = vsel %vm36, %v420, 0
  %v448 = vsel %vm36, %v421, 0
  %v451 = vsel %vm36, %v422, 0
  %v454 = vsel %vm36, %v423, 0
  %v457 = vsel %vm36, %v424, 0
  %v460 = vsel %vm36, %v425, 0
  %v463 = vsel %vm36, %v426, 0
  %v466 = vsel %vm36, %v427, 0
  %v469 = vsel %vm36, %v428, 0
  %v472 = vsel %vm36, %v429, 0
  %v475 = vsel %vm36, %v430, 0
  %v478 = vsel %vm36, %v431, 0
  %v481 = vsel %vm36, %v432, 0
  %v484 = vsel %vm36, %v433, 0
  %v487 = vsel %vm36, %v434, 0
  %v490 = vsel %vm36, %v435, 0
  %492 = vmatpush.msra.mxu0 0.0
  %493 = vmatpush.msra.mxu0 0.0
  %494 = vmatpush.msra.mxu0 0.0
  %495 = vmatpush.msra.mxu0 0.0
  %496 = vmatpush.msra.mxu0 0.0
  %497 = vmatpush.msra.mxu0 0.0
  %498 = vmatpush.msra.mxu0 0.0
  %499 = vmatpush.msra.mxu0 0.0
  %500 = vmatpush.msra.mxu0 0.0
  %501 = vmatpush.msra.mxu0 0.0
  %502 = vmatpush.msra.mxu0 0.0
  %503 = vmatpush.msra.mxu0 0.0
  %504 = vmatpush.msra.mxu0 %v439
  %505 = vmatpush.msra.mxu0 %v438
  %506 = vmatpush.msra.mxu0 %v437
  %507 = vmatpush.msra.mxu0 %v436
  %508 = vmatmul.f32.gmra.mxu0 %v445
  %v509 = vpop.f32.mrf.mxu0
  %v510 = vadd.f32 %v442, %v509
  %511 = vmatmul.f32.gmra.mxu0 %v448
  %v512 = vpop.f32.mrf.mxu0
  %v513 = vadd.f32 %v442, %v512
  %514 = vmatmul.f32.gmra.mxu0 %v451
  %v515 = vpop.f32.mrf.mxu0
  %v516 = vadd.f32 %v442, %v515
  %517 = vmatmul.f32.gmra.mxu0 %v454
  %v518 = vpop.f32.mrf.mxu0
  %v519 = vadd.f32 %v442, %v518
  %520 = vmatmul.f32.gmra.mxu0 %v457
  %v521 = vpop.f32.mrf.mxu0
  %v522 = vadd.f32 %v442, %v521
  %523 = vmatmul.f32.gmra.mxu0 %v460
  %v524 = vpop.f32.mrf.mxu0
  %v525 = vadd.f32 %v442, %v524
  %526 = vmatmul.f32.gmra.mxu0 %v463
  %v527 = vpop.f32.mrf.mxu0
  %v528 = vadd.f32 %v442, %v527
  %529 = vmatmul.f32.gmra.mxu0 %v466
  %v530 = vpop.f32.mrf.mxu0
  %v531 = vadd.f32 %v442, %v530
  %532 = vmatmul.f32.gmra.mxu0 %v469
  %v533 = vpop.f32.mrf.mxu0
  %v534 = vadd.f32 %v442, %v533
  %535 = vmatmul.f32.gmra.mxu0 %v472
  %v536 = vpop.f32.mrf.mxu0
  %v537 = vadd.f32 %v442, %v536
  %538 = vmatmul.f32.gmra.mxu0 %v475
  %v539 = vpop.f32.mrf.mxu0
  %v540 = vadd.f32 %v442, %v539
  %541 = vmatmul.f32.gmra.mxu0 %v478
  %v542 = vpop.f32.mrf.mxu0
  %v543 = vadd.f32 %v442, %v542
  %544 = vmatmul.f32.gmra.mxu0 %v481
  %v545 = vpop.f32.mrf.mxu0
  %v546 = vadd.f32 %v442, %v545
  %547 = vmatmul.f32.gmra.mxu0 %v484
  %v548 = vpop.f32.mrf.mxu0
  %v549 = vadd.f32 %v442, %v548
  %550 = vmatmul.f32.gmra.mxu0 %v487
  %v551 = vpop.f32.mrf.mxu0
  %v552 = vadd.f32 %v442, %v551
  %553 = vmatmul.f32.gmra.mxu0 %v490
  %v554 = vpop.f32.mrf.mxu0
  %v555 = vadd.f32 %v442, %v554
  %556 = vdwg.mxu0
  %vm557 = vcmask 785408
  %558 = vst.msk [vmem:[%s5] sm:$0xff] %vm557, %v510
  %559 = vst.msk [vmem:[%s5 + $0x8] sm:$0xff] %vm557, %v513
  %560 = vst.msk [vmem:[%s5 + $0x10] sm:$0xff] %vm557, %v516
  %561 = vst.msk [vmem:[%s5 + $0x18] sm:$0xff] %vm557, %v519
  %562 = vst.msk [vmem:[%s5 + $0x20] sm:$0xff] %vm557, %v522
  %563 = vst.msk [vmem:[%s5 + $0x28] sm:$0xff] %vm557, %v525
  %564 = vst.msk [vmem:[%s5 + $0x30] sm:$0xff] %vm557, %v528
  %565 = vst.msk [vmem:[%s5 + $0x38] sm:$0xff] %vm557, %v531
  %566 = vst.msk [vmem:[%s5 + $0x40] sm:$0xff] %vm557, %v534
  %567 = vst.msk [vmem:[%s5 + $0x48] sm:$0xff] %vm557, %v537
  %568 = vst.msk [vmem:[%s5 + $0x50] sm:$0xff] %vm557, %v540
  %569 = vst.msk [vmem:[%s5 + $0x58] sm:$0xff] %vm557, %v543
  %570 = vst.msk [vmem:[%s5 + $0x60] sm:$0xff] %vm557, %v546
  %571 = vst.msk [vmem:[%s5 + $0x68] sm:$0xff] %vm557, %v549
  %572 = vst.msk [vmem:[%s5 + $0x70] sm:$0xff] %vm557, %v552
  %573 = vst.msk [vmem:[%s5 + $0x78] sm:$0xff] %vm557, %v555
  // Predicated region
  $region22: #{tpu_custom_call.1} parent=0 // pred_check
    _
  $region23: #{tpu_custom_call.1} parent=0 // pred_check_branch
    %575 = sbr.rel (0) target = $region25
  $region24: #{tpu_custom_call.1} parent=0 // pred_region
    _
  $region25: #{tpu_custom_call.1} parent=0 // pred_fallthru
    _
  // Predicated region
  $region26: #{tpu_custom_call.1} parent=0 // pred_check
    _
  $region27: #{tpu_custom_call.1} parent=0 // pred_check_branch
    %577 = sbr.rel (0) target = $region29
  $region28: #{tpu_custom_call.1} parent=0 // pred_region
    _
  $region29: #{tpu_custom_call.1} parent=0 // pred_fallthru
    _

</llo_original>
